<compile_context>
chip_gen: v5e
topology: v5e:2x2
jax: 0.10.0
libtpu: 0.0.40
codegen_flags: <defaults>
</compile_context>

<pallas_src>
import jax
import jax.numpy as jnp
from jax.experimental import pallas as pl
from jax.experimental.pallas import tpu as pltpu


_RECIP_MAGIC = 0x7EF311C3  # exponent bit-trick seed for 1/x (positive normals)


def _mish_kernel(x_ref, o_ref):
    x = x_ref[...].astype(jnp.float32)
    # mish(x) = x * tanh(softplus(x)) = x * N / D with a single exp:
    #   e = exp(-|x|) in (0, 1]   (never overflows)
    #   x >= 0:  N = 1 + 2e        D = 1 + 2e + 2e^2
    #   x <  0:  N = e^2 + 2e      D = e^2 + 2e + 2
    e = jnp.exp(-jnp.abs(x))                      # the only EUP op per element
    t = e * (e + 2.0)
    pos = x >= 0.0
    num = jnp.where(pos, 1.0 + 2.0 * e, t)
    den = jnp.where(pos, 1.0 + 2.0 * e + 2.0 * e * e, t + 2.0)   # den in (1, 5]
    # VPU-only reciprocal: bit-trick seed + 3 Newton steps (~f32 exact).  Keeps
    # the single EUP pipe free for exp so it can't bind on v7x (2 EUP ops/elem
    # at ~3.2 TB/s would otherwise saturate it); VALU has slack in a mem-bound
    # elementwise kernel, so the extra Newton/bit ops are free.
    seed = pltpu.bitcast(
        jnp.int32(_RECIP_MAGIC) - pltpu.bitcast(den, jnp.int32), jnp.float32)
    inv = seed * (2.0 - den * seed)
    inv = inv * (2.0 - den * inv)
    inv = inv * (2.0 - den * inv)
    o_ref[...] = (x * num * inv).astype(o_ref.dtype)


def _mish_jnp(x):
    """Plain-XLA fallback for tiny tensors (fixed pallas_call overhead dominates)."""
    xf = x.astype(jnp.float32)
    return (xf * jnp.tanh(jax.nn.softplus(xf))).astype(x.dtype)


def _round_up(a, m):
    return -(-a // m) * m


def _sublane_multiple(dtype):
    bits = jnp.dtype(dtype).itemsize * 8
    if bits >= 32:
        return 8
    if bits == 16:
        return 16
    return 32


def _choose_lanes(n, max_lanes):
    """Largest multiple of 128 (<= max_lanes) that divides n; 0 if none."""
    best = 0
    c = 128
    while c <= max_lanes:
        if n % c == 0:
            best = c
        c += 128
    return best


def _default_block_bytes():
    try:
        kind = jax.devices()[0].device_kind.lower()
    except Exception:
        return 2 << 20
    if "v6" in kind or "v7" in kind:
        # 32 MiB scoped-VMEM default: 4 MiB * 2 bufs * (in + out) = 16 MiB.
        return 4 << 20
    # v5e's 16 MiB scoped default: 2 MiB * 2 bufs * (in + out) = 8 MiB.
    return 2 << 20


def mish(x, *, block_bytes=None, min_pallas_bytes=1 << 20, max_lanes=2048):
    """Elementwise Mish over an arbitrarily shaped array (NCHW in the demo)."""
    orig_shape, dtype = x.shape, x.dtype
    n = x.size
    itemsize = jnp.dtype(dtype).itemsize

    if n == 0:
        return x
    if n * itemsize < min_pallas_bytes:
        # Tiny tensors: let XLA fuse a plain elementwise op instead.
        return _mish_jnp(x)

    if block_bytes is None:
        block_bytes = _default_block_bytes()
    mult = _sublane_multiple(dtype)

    x_flat = x.reshape(-1)
    lanes = _choose_lanes(n, max_lanes)
    padded = False
    if lanes == 0:
        # n is not a multiple of 128: pad once up to a lane multiple.
        # TODO(synk): handle this ragged tail with a masked pltpu.store on a
        # 1-D last block to drop the pad/slice round trip for odd sizes too.
        lanes = min(max_lanes, 1024)
        n_pad = _round_up(n, lanes)
        x_flat = jnp.pad(x_flat, (0, n_pad - n))
        padded = True
    else:
        n_pad = n

    rows = n_pad // lanes
    x2d = x_flat.reshape(rows, lanes)

    # Rows per block: ~block_bytes worth, rounded to the dtype sublane multiple.
    cap = max(mult, (block_bytes // (lanes * itemsize) // mult) * mult)
    if rows <= cap:
        tr = rows  # single block covering the full row extent
        # Megacore: never leave a v7x TensorCore idle on mid-size inputs.
        if n_pad * itemsize > (1 << 20) and rows >= 2 * mult:
            tr = _round_up(-(-rows // 2), mult)      # >= 2 blocks (last may be ragged)
    else:
        tr = cap

    grid = pl.cdiv(rows, tr)  # ragged last block handled by Pallas OOB masking

    out2d = pl.pallas_call(
        _mish_kernel,
        out_shape=jax.ShapeDtypeStruct((rows, lanes), dtype),
        grid_spec=pltpu.PrefetchScalarGridSpec(
            num_scalar_prefetch=0,
            grid=(grid,),
            in_specs=[pl.BlockSpec((tr, lanes), lambda i: (i, 0))],
            out_specs=pl.BlockSpec((tr, lanes), lambda i: (i, 0)),
        ),
        compiler_params=pltpu.CompilerParams(
            dimension_semantics=("parallel",),
        ),
        cost_estimate=pl.CostEstimate(
            flops=20 * n,
            transcendentals=n,
            bytes_accessed=2 * n * itemsize,
        ),
    )(x2d)

    out_flat = out2d.reshape(-1)
    if padded:
        out_flat = out_flat[:n]
    return out_flat.reshape(orig_shape)


if __name__ == "__main__":
    key = jax.random.PRNGKey(0)

    def _ref(v):
        vf = v.astype(jnp.float32)
        return vf * jnp.tanh(jax.nn.softplus(vf))

    # Demo shape from the module (NCHW), forced through the Pallas path.
    x = jax.random.normal(key, (2, 4, 16, 16), dtype=jnp.float32)
    out = mish(x, min_pallas_bytes=0)
    jax.block_until_ready(out)
    assert out.shape == x.shape and out.dtype == x.dtype
    assert jnp.allclose(out, _ref(x), atol=1e-5, rtol=1e-5)

    # Multi-block path with a ragged last row-block (exercises partial-block
    # masking + megacore split); no padding since n % 2048 == 0.
    k1, k2 = jax.random.split(key)
    x_big = jax.random.normal(k1, (2, 18, 96, 96), dtype=jnp.float32)
    out_big = mish(x_big)
    jax.block_until_ready(out_big)
    assert jnp.allclose(out_big, _ref(x_big), atol=1e-5, rtol=1e-5)

    # Unaligned (n % 128 != 0) bf16 input: exercises the padded fallback path
    # and the dtype-aware sublane rounding.
    x_bf16 = jax.random.normal(k2, (2, 3, 17, 23), dtype=jnp.bfloat16)
    out_bf16 = mish(x_bf16, min_pallas_bytes=0)
    jax.block_until_ready(out_bf16)
    assert out_bf16.shape == x_bf16.shape and out_bf16.dtype == jnp.bfloat16
    assert jnp.allclose(out_bf16.astype(jnp.float32), _ref(x_bf16),
                        atol=3e-2, rtol=3e-2)

    print("KERNEL_OK")
</pallas_src>

<mosaic_0001>
module attributes {stable_mosaic.version = 11 : i64} {
  func.func @_mish_kernel(%arg0: i32, %arg1: memref<1x2048xf32, #tpu.memory_space<vmem>>, %arg2: memref<1x2048xf32, #tpu.memory_space<vmem>>) attributes {dimension_semantics = [#tpu.dimension_semantics<parallel>], iteration_bounds = array<i64: 1>, scalar_prefetch = 0 : i64, scratch_operands = 0 : i64, tpu.core_type = #tpu.core_type<tc>, window_params = [{transform_indices = @transform_0, window_bounds = array<i64: 1, 2048>}, {transform_indices = @transform_1, window_bounds = array<i64: 1, 2048>}]} {
    %c0 = arith.constant 0 : index
    %c0_0 = arith.constant 0 : index
    %0 = vector.load %arg1[%c0, %c0_0] : memref<1x2048xf32, #tpu.memory_space<vmem>>, vector<1x2048xf32>
    %1 = math.absf %0 : vector<1x2048xf32>
    %cst = arith.constant 0.000000e+00 : f32
    %2 = vector.broadcast %cst : f32 to vector<1x2048xf32>
    %3 = arith.subf %2, %1 : vector<1x2048xf32>
    %4 = math.exp %3 : vector<1x2048xf32>
    %cst_1 = arith.constant 2.000000e+00 : f32
    %5 = vector.broadcast %cst_1 : f32 to vector<1x2048xf32>
    %6 = arith.addf %4, %5 : vector<1x2048xf32>
    %7 = arith.mulf %4, %6 : vector<1x2048xf32>
    %cst_2 = arith.constant 0.000000e+00 : f32
    %8 = vector.broadcast %cst_2 : f32 to vector<1x2048xf32>
    %9 = arith.cmpf oge, %0, %8 : vector<1x2048xf32>
    %cst_3 = arith.constant 2.000000e+00 : f32
    %10 = vector.broadcast %cst_3 : f32 to vector<1x2048xf32>
    %11 = arith.mulf %10, %4 : vector<1x2048xf32>
    %cst_4 = arith.constant 1.000000e+00 : f32
    %12 = vector.broadcast %cst_4 : f32 to vector<1x2048xf32>
    %13 = arith.addf %12, %11 : vector<1x2048xf32>
    %14 = arith.select %9, %13, %7 : vector<1x2048xi1>, vector<1x2048xf32>
    %cst_5 = arith.constant 2.000000e+00 : f32
    %15 = vector.broadcast %cst_5 : f32 to vector<1x2048xf32>
    %16 = arith.mulf %15, %4 : vector<1x2048xf32>
    %cst_6 = arith.constant 1.000000e+00 : f32
    %17 = vector.broadcast %cst_6 : f32 to vector<1x2048xf32>
    %18 = arith.addf %17, %16 : vector<1x2048xf32>
    %cst_7 = arith.constant 2.000000e+00 : f32
    %19 = vector.broadcast %cst_7 : f32 to vector<1x2048xf32>
    %20 = arith.mulf %19, %4 : vector<1x2048xf32>
    %21 = arith.mulf %20, %4 : vector<1x2048xf32>
    %22 = arith.addf %18, %21 : vector<1x2048xf32>
    %cst_8 = arith.constant 2.000000e+00 : f32
    %23 = vector.broadcast %cst_8 : f32 to vector<1x2048xf32>
    %24 = arith.addf %7, %23 : vector<1x2048xf32>
    %25 = arith.select %9, %22, %24 : vector<1x2048xi1>, vector<1x2048xf32>
    %26 = tpu.bitcast %25 : vector<1x2048xf32> -> vector<1x2048xi32>
    %c2129859011_i32 = arith.constant 2129859011 : i32
    %27 = vector.broadcast %c2129859011_i32 : i32 to vector<1x2048xi32>
    %28 = arith.subi %27, %26 : vector<1x2048xi32>
    %29 = tpu.bitcast %28 : vector<1x2048xi32> -> vector<1x2048xf32>
    %30 = arith.mulf %25, %29 : vector<1x2048xf32>
    %cst_9 = arith.constant 2.000000e+00 : f32
    %31 = vector.broadcast %cst_9 : f32 to vector<1x2048xf32>
    %32 = arith.subf %31, %30 : vector<1x2048xf32>
    %33 = arith.mulf %29, %32 : vector<1x2048xf32>
    %34 = arith.mulf %25, %33 : vector<1x2048xf32>
    %cst_10 = arith.constant 2.000000e+00 : f32
    %35 = vector.broadcast %cst_10 : f32 to vector<1x2048xf32>
    %36 = arith.subf %35, %34 : vector<1x2048xf32>
    %37 = arith.mulf %33, %36 : vector<1x2048xf32>
    %38 = arith.mulf %25, %37 : vector<1x2048xf32>
    %cst_11 = arith.constant 2.000000e+00 : f32
    %39 = vector.broadcast %cst_11 : f32 to vector<1x2048xf32>
    %40 = arith.subf %39, %38 : vector<1x2048xf32>
    %41 = arith.mulf %37, %40 : vector<1x2048xf32>
    %42 = arith.mulf %0, %14 : vector<1x2048xf32>
    %43 = arith.mulf %42, %41 : vector<1x2048xf32>
    %c0_12 = arith.constant 0 : index
    %c0_13 = arith.constant 0 : index
    %44 = vector.load %arg2[%c0_12, %c0_13] : memref<1x2048xf32, #tpu.memory_space<vmem>>, vector<1x2048xf32>
    tpu.vector_store %arg2[%c0_12, %c0_13], %43 {strides = array<i32>} : memref<1x2048xf32, #tpu.memory_space<vmem>>, vector<1x2048xf32>,
    return
  }
  func.func @transform_0(%arg0: i32) -> (i32, i32) {
    %c0_i32 = arith.constant 0 : i32
    %c0_i32_0 = arith.constant 0 : i32
    return %arg0, %c0_i32 : i32, i32
  }
  func.func @transform_1(%arg0: i32) -> (i32, i32) {
    %c0_i32 = arith.constant 0 : i32
    %c0_i32_0 = arith.constant 0 : i32
    return %arg0, %c0_i32 : i32, i32
  }
}

</mosaic_0001>

<llo_original>
// kernel: tpu_custom_call.1
$region0: #{tpu_custom_call.1}
  #allocation0 [shape = 'u32[]', space=smem, size = 0x4, offset = 0x4, fixed_abs, tag = 'smem constant byte address 0x4 - core index']
  #allocation1 [shape = 'u32[72,128]{1,0:T(1,128)}', space=vmem, size = 0x9000, scoped, tag = 'internal scratch']
  %s0 = inlined_call_operand.hbm [shape: f32[1,2048], index: 0, kind: input, shape index: {}]
  %s1 = inlined_call_operand.hbm [shape: f32[1,2048], index: 1, kind: output, shape index: {}]
  %s2 = sld [smem:[#allocation0]]
  $region18: #{tpu_custom_call.1} parent=0
    _
  %s4 = ssub.s32 1, %s2
  %s5 = scalar_select 0, %s4, %s2
  $region1: #{tpu_custom_call.1} parent=0
    #allocation2 [shape = 'u8[8192]{0}', space=vmem, size = 0x2000, scoped, tag = 'input window, operand 0, single buffered']
    #allocation3 [shape = 's32[1]{0}', space=sflag, size = 0x4, scoped, tag = 'scoped memory for tpu_custom_call.1']
    #allocation4 [shape = 's32[1]{0}', space=sflag, size = 0x4, scoped, tag = 'scoped memory for tpu_custom_call.1']
    #allocation5 [shape = 'u8[8192]{0}', space=vmem, size = 0x2000, scoped, tag = 'output window, operand 0, single buffered']
    %6 = vsyncpa [#allocation3], 0
    %7 = vsyncpa [#allocation4], 0
    // Predicated region
    $region2: #{tpu_custom_call.1} parent=1 // pred_check
      _
    $region3: #{tpu_custom_call.1} parent=1 // pred_check_branch
      %9 = sbr.rel (0) target = $region5
    $region4: #{tpu_custom_call.1} parent=1 // pred_region
      %11 = vsyncadd [#allocation3], 0
      %s13 = sshll.u32 %s0, 4
      %s14 = int_to_ptr.hbm [resolvable:$true] %s13
      %s15 = sshll.u32 [#allocation2], 4
      %s16 = int_to_ptr.vmem [resolvable:$true] %s15
      %18 = dma.hbm_to_vmem [thread:$0]  %s14, 256, %s16, [#allocation3]
    $region5: #{tpu_custom_call.1} parent=1 // pred_fallthru
      _
    // Predicated region
    $region6: #{tpu_custom_call.1} parent=1 // pred_check
      _
    $region7: #{tpu_custom_call.1} parent=1 // pred_check_branch
      %20 = sbr.rel (0) target = $region9
    $region8: #{tpu_custom_call.1} parent=1 // pred_region
      %22 = dma.done [#allocation3], 256
    $region9: #{tpu_custom_call.1} parent=1 // pred_fallthru
      _
    %v23 = vld [vmem:[#allocation2] sm:$0xff]
    %v24 = vld [vmem:[#allocation2 + $0x8] sm:$0xff]
    %v25 = vand.u32 2147483647, %v23
    %v26 = vand.u32 2147483647, %v24
    %v27 = vsub.f32 0.0, %v25
    %v28 = vsub.f32 0.0, %v26
    %v29 = vmul.f32 %v27, 1.442695
    %v30 = vpow.pop %v29
    %v31 = vmul.f32 %v28, 1.442695
    %v32 = vpow.pop %v31
    %v33 = vadd.f32 %v30, 2.0
    %v34 = vadd.f32 %v32, 2.0
    %v35 = vmul.f32 %v30, %v33
    %v36 = vmul.f32 %v32, %v34
    %vm37 = vcmp.ge.f32.partialorder %v23, 0.0
    %vm38 = vcmp.ge.f32.partialorder %v24, 0.0
    %v39 = vmul.f32 %v30, 2.0
    %v40 = vmul.f32 %v32, 2.0
    %v41 = vadd.f32 %v39, 1.0
    %v42 = vadd.f32 %v40, 1.0
    %v43 = vsel %vm37, %v41, %v35
    %v44 = vsel %vm38, %v42, %v36
    %v45 = vmul.f32 %v39, %v30
    %v46 = vmul.f32 %v40, %v32
    %v47 = vadd.f32 %v41, %v45
    %v48 = vadd.f32 %v42, %v46
    %v49 = vadd.f32 %v35, 2.0
    %v50 = vadd.f32 %v36, 2.0
    %v51 = vsel %vm37, %v47, %v49
    %v52 = vsel %vm38, %v48, %v50
    %v55 = vperm.slane %v51, 0
    %v56 = vperm.slane %v51, 1
    %v57 = vperm.slane %v51, 2
    %v58 = vperm.slane %v51, 3
    %v59 = vperm.slane %v51, 4
    %v60 = vperm.slane %v51, 5
    %v61 = vperm.slane %v51, 6
    %v62 = vperm.slane %v51, 7
    %v63 = vperm.slane %v52, 0
    %v64 = vperm.slane %v52, 1
    %v65 = vperm.slane %v52, 2
    %v66 = vperm.slane %v52, 3
    %v67 = vperm.slane %v52, 4
    %v68 = vperm.slane %v52, 5
    %v69 = vperm.slane %v52, 6
    %v70 = vperm.slane %v52, 7
    %v71 = vsub.s32 2129859011, %v55
    %v72 = vsub.s32 2129859011, %v56
    %v73 = vsub.s32 2129859011, %v57
    %v74 = vsub.s32 2129859011, %v58
    %v75 = vsub.s32 2129859011, %v59
    %v76 = vsub.s32 2129859011, %v60
    %v77 = vsub.s32 2129859011, %v61
    %v78 = vsub.s32 2129859011, %v62
    %v79 = vsub.s32 2129859011, %v63
    %v80 = vsub.s32 2129859011, %v64
    %v81 = vsub.s32 2129859011, %v65
    %v82 = vsub.s32 2129859011, %v66
    %v83 = vsub.s32 2129859011, %v67
    %v84 = vsub.s32 2129859011, %v68
    %v85 = vsub.s32 2129859011, %v69
    %v86 = vsub.s32 2129859011, %v70
    %v103 = vrot.slane %v72, 7
    %v104 = vrot.slane %v73, 6
    %v105 = vrot.slane %v74, 5
    %v106 = vrot.slane %v75, 4
    %v107 = vrot.slane %v76, 3
    %v108 = vrot.slane %v77, 2
    %v109 = vrot.slane %v78, 1
    %v110 = vrot.slane %v80, 7
    %v111 = vrot.slane %v81, 6
    %v112 = vrot.slane %v82, 5
    %v113 = vrot.slane %v83, 4
    %v114 = vrot.slane %v84, 3
    %v115 = vrot.slane %v85, 2
    %v116 = vrot.slane %v86, 1
    %vm117 = vcmask 1040384
    %v118 = vsel %vm117, %v71, %v103
    %vm119 = vcmask 1042434
    %v120 = vsel %vm119, %v104, %v105
    %vm121 = vcmask 1041408
    %v122 = vsel %vm121, %v118, %v120
    %vm123 = vcmask 1044484
    %v124 = vsel %vm123, %v106, %v107
    %vm125 = vcmask 1046534
    %v126 = vsel %vm125, %v108, %v109
    %vm127 = vcmask 1045508
    %v128 = vsel %vm127, %v124, %v126
    %vm129 = vcmask 1043456
    %v130 = vsel %vm129, %v122, %v128
    %v131 = vsel %vm117, %v79, %v110
    %v132 = vsel %vm119, %v111, %v112
    %v133 = vsel %vm121, %v131, %v132
    %v134 = vsel %vm123, %v113, %v114
    %v135 = vsel %vm125, %v115, %v116
    %v136 = vsel %vm127, %v134, %v135
    %v137 = vsel %vm129, %v133, %v136
    %v140 = vmul.f32 %v51, %v130
    %v141 = vmul.f32 %v52, %v137
    %v142 = vsub.f32 2.0, %v140
    %v143 = vsub.f32 2.0, %v141
    %v146 = vperm.slane %v142, 0
    %v147 = vperm.slane %v142, 1
    %v148 = vperm.slane %v142, 2
    %v149 = vperm.slane %v142, 3
    %v150 = vperm.slane %v142, 4
    %v151 = vperm.slane %v142, 5
    %v152 = vperm.slane %v142, 6
    %v153 = vperm.slane %v142, 7
    %v154 = vperm.slane %v143, 0
    %v155 = vperm.slane %v143, 1
    %v156 = vperm.slane %v143, 2
    %v157 = vperm.slane %v143, 3
    %v158 = vperm.slane %v143, 4
    %v159 = vperm.slane %v143, 5
    %v160 = vperm.slane %v143, 6
    %v161 = vperm.slane %v143, 7
    %v178 = vmul.f32 %v71, %v146
    %v179 = vmul.f32 %v72, %v147
    %v180 = vmul.f32 %v73, %v148
    %v181 = vmul.f32 %v74, %v149
    %v182 = vmul.f32 %v75, %v150
    %v183 = vmul.f32 %v76, %v151
    %v184 = vmul.f32 %v77, %v152
    %v185 = vmul.f32 %v78, %v153
    %v186 = vmul.f32 %v79, %v154
    %v187 = vmul.f32 %v80, %v155
    %v188 = vmul.f32 %v81, %v156
    %v189 = vmul.f32 %v82, %v157
    %v190 = vmul.f32 %v83, %v158
    %v191 = vmul.f32 %v84, %v159
    %v192 = vmul.f32 %v85, %v160
    %v193 = vmul.f32 %v86, %v161
    %v210 = vrot.slane %v179, 7
    %v211 = vrot.slane %v180, 6
    %v212 = vrot.slane %v181, 5
    %v213 = vrot.slane %v182, 4
    %v214 = vrot.slane %v183, 3
    %v215 = vrot.slane %v184, 2
    %v216 = vrot.slane %v185, 1
    %v217 = vrot.slane %v187, 7
    %v218 = vrot.slane %v188, 6
    %v219 = vrot.slane %v189, 5
    %v220 = vrot.slane %v190, 4
    %v221 = vrot.slane %v191, 3
    %v222 = vrot.slane %v192, 2
    %v223 = vrot.slane %v193, 1
    %v224 = vsel %vm117, %v178, %v210
    %v225 = vsel %vm119, %v211, %v212
    %v226 = vsel %vm121, %v224, %v225
    %v227 = vsel %vm123, %v213, %v214
    %v228 = vsel %vm125, %v215, %v216
    %v229 = vsel %vm127, %v227, %v228
    %v230 = vsel %vm129, %v226, %v229
    %v231 = vsel %vm117, %v186, %v217
    %v232 = vsel %vm119, %v218, %v219
    %v233 = vsel %vm121, %v231, %v232
    %v234 = vsel %vm123, %v220, %v221
    %v235 = vsel %vm125, %v222, %v223
    %v236 = vsel %vm127, %v234, %v235
    %v237 = vsel %vm129, %v233, %v236
    %v240 = vmul.f32 %v51, %v230
    %v241 = vmul.f32 %v52, %v237
    %v242 = vsub.f32 2.0, %v240
    %v243 = vsub.f32 2.0, %v241
    %v246 = vperm.slane %v242, 0
    %v247 = vperm.slane %v242, 1
    %v248 = vperm.slane %v242, 2
    %v249 = vperm.slane %v242, 3
    %v250 = vperm.slane %v242, 4
    %v251 = vperm.slane %v242, 5
    %v252 = vperm.slane %v242, 6
    %v253 = vperm.slane %v242, 7
    %v254 = vperm.slane %v243, 0
    %v255 = vperm.slane %v243, 1
    %v256 = vperm.slane %v243, 2
    %v257 = vperm.slane %v243, 3
    %v258 = vperm.slane %v243, 4
    %v259 = vperm.slane %v243, 5
    %v260 = vperm.slane %v243, 6
    %v261 = vperm.slane %v243, 7
    %v278 = vmul.f32 %v178, %v246
    %v279 = vmul.f32 %v179, %v247
    %v280 = vmul.f32 %v180, %v248
    %v281 = vmul.f32 %v181, %v249
    %v282 = vmul.f32 %v182, %v250
    %v283 = vmul.f32 %v183, %v251
    %v284 = vmul.f32 %v184, %v252
    %v285 = vmul.f32 %v185, %v253
    %v286 = vmul.f32 %v186, %v254
    %v287 = vmul.f32 %v187, %v255
    %v288 = vmul.f32 %v188, %v256
    %v289 = vmul.f32 %v189, %v257
    %v290 = vmul.f32 %v190, %v258
    %v291 = vmul.f32 %v191, %v259
    %v292 = vmul.f32 %v192, %v260
    %v293 = vmul.f32 %v193, %v261
    %v310 = vrot.slane %v279, 7
    %v311 = vrot.slane %v280, 6
    %v312 = vrot.slane %v281, 5
    %v313 = vrot.slane %v282, 4
    %v314 = vrot.slane %v283, 3
    %v315 = vrot.slane %v284, 2
    %v316 = vrot.slane %v285, 1
    %v317 = vrot.slane %v287, 7
    %v318 = vrot.slane %v288, 6
    %v319 = vrot.slane %v289, 5
    %v320 = vrot.slane %v290, 4
    %v321 = vrot.slane %v291, 3
    %v322 = vrot.slane %v292, 2
    %v323 = vrot.slane %v293, 1
    %v324 = vsel %vm117, %v278, %v310
    %v325 = vsel %vm119, %v311, %v312
    %v326 = vsel %vm121, %v324, %v325
    %v327 = vsel %vm123, %v313, %v314
    %v328 = vsel %vm125, %v315, %v316
    %v329 = vsel %vm127, %v327, %v328
    %v330 = vsel %vm129, %v326, %v329
    %v331 = vsel %vm117, %v286, %v317
    %v332 = vsel %vm119, %v318, %v319
    %v333 = vsel %vm121, %v331, %v332
    %v334 = vsel %vm123, %v320, %v321
    %v335 = vsel %vm125, %v322, %v323
    %v336 = vsel %vm127, %v334, %v335
    %v337 = vsel %vm129, %v333, %v336
    %v340 = vmul.f32 %v51, %v330
    %v341 = vmul.f32 %v52, %v337
    %v342 = vsub.f32 2.0, %v340
    %v343 = vsub.f32 2.0, %v341
    %v346 = vperm.slane %v342, 0
    %v347 = vperm.slane %v342, 1
    %v348 = vperm.slane %v342, 2
    %v349 = vperm.slane %v342, 3
    %v350 = vperm.slane %v342, 4
    %v351 = vperm.slane %v342, 5
    %v352 = vperm.slane %v342, 6
    %v353 = vperm.slane %v342, 7
    %v354 = vperm.slane %v343, 0
    %v355 = vperm.slane %v343, 1
    %v356 = vperm.slane %v343, 2
    %v357 = vperm.slane %v343, 3
    %v358 = vperm.slane %v343, 4
    %v359 = vperm.slane %v343, 5
    %v360 = vperm.slane %v343, 6
    %v361 = vperm.slane %v343, 7
    %v378 = vmul.f32 %v278, %v346
    %v379 = vmul.f32 %v279, %v347
    %v380 = vmul.f32 %v280, %v348
    %v381 = vmul.f32 %v281, %v349
    %v382 = vmul.f32 %v282, %v350
    %v383 = vmul.f32 %v283, %v351
    %v384 = vmul.f32 %v284, %v352
    %v385 = vmul.f32 %v285, %v353
    %v386 = vmul.f32 %v286, %v354
    %v387 = vmul.f32 %v287, %v355
    %v388 = vmul.f32 %v288, %v356
    %v389 = vmul.f32 %v289, %v357
    %v390 = vmul.f32 %v290, %v358
    %v391 = vmul.f32 %v291, %v359
    %v392 = vmul.f32 %v292, %v360
    %v393 = vmul.f32 %v293, %v361
    %v394 = vmul.f32 %v23, %v43
    %v395 = vmul.f32 %v24, %v44
    %v412 = vrot.slane %v379, 7
    %v413 = vrot.slane %v380, 6
    %v414 = vrot.slane %v381, 5
    %v415 = vrot.slane %v382, 4
    %v416 = vrot.slane %v383, 3
    %v417 = vrot.slane %v384, 2
    %v418 = vrot.slane %v385, 1
    %v419 = vrot.slane %v387, 7
    %v420 = vrot.slane %v388, 6
    %v421 = vrot.slane %v389, 5
    %v422 = vrot.slane %v390, 4
    %v423 = vrot.slane %v391, 3
    %v424 = vrot.slane %v392, 2
    %v425 = vrot.slane %v393, 1
    %v426 = vsel %vm117, %v378, %v412
    %v427 = vsel %vm119, %v413, %v414
    %v428 = vsel %vm121, %v426, %v427
    %v429 = vsel %vm123, %v415, %v416
    %v430 = vsel %vm125, %v417, %v418
    %v431 = vsel %vm127, %v429, %v430
    %v432 = vsel %vm129, %v428, %v431
    %v433 = vsel %vm117, %v386, %v419
    %v434 = vsel %vm119, %v420, %v421
    %v435 = vsel %vm121, %v433, %v434
    %v436 = vsel %vm123, %v422, %v423
    %v437 = vsel %vm125, %v424, %v425
    %v438 = vsel %vm127, %v436, %v437
    %v439 = vsel %vm129, %v435, %v438
    %v442 = vmul.f32 %v394, %v432
    %v443 = vmul.f32 %v395, %v439
    %444 = vst [vmem:[#allocation5] sm:$0xff] %v442
    %445 = vst [vmem:[#allocation5 + $0x8] sm:$0xff] %v443
    // Predicated region
    $region10: #{tpu_custom_call.1} parent=1 // pred_check
      _
    $region11: #{tpu_custom_call.1} parent=1 // pred_check_branch
      %447 = sbr.rel (0) target = $region13
    $region12: #{tpu_custom_call.1} parent=1 // pred_region
      %449 = vsyncadd [#allocation4], 0
      %s451 = sshll.u32 [#allocation5], 4
      %s452 = int_to_ptr.vmem [resolvable:$true] %s451
      %s453 = sshll.u32 %s1, 4
      %s454 = int_to_ptr.hbm [resolvable:$true] %s453
      %456 = dma.vmem_to_hbm [thread:$0]  %s452, 256, %s454, [#allocation4]
    $region13: #{tpu_custom_call.1} parent=1 // pred_fallthru
      _
    // Predicated region
    $region14: #{tpu_custom_call.1} parent=1 // pred_check
      _
    $region15: #{tpu_custom_call.1} parent=1 // pred_check_branch
      %458 = sbr.rel (0) target = $region17
    $region16: #{tpu_custom_call.1} parent=1 // pred_region
      %460 = dma.done [#allocation4], 256
    $region17: #{tpu_custom_call.1} parent=1 // pred_fallthru
      _
    %461 = vsyncpa [#allocation3], 1
    %462 = vsyncpa [#allocation4], 1

</llo_original>
